<compile_context>
chip_gen: v5e
topology: v5e:2x2
jax: 0.10.0
libtpu: 0.0.40
codegen_flags: <defaults>
</compile_context>

<pallas_src>
import jax
import jax.numpy as jnp
from jax.experimental import pallas as pl
from jax.experimental.pallas import tpu as pltpu

_LANES = 128
_SUBLANES = 8
_MAX_BLOCK_ROWS = 4096  # (4096,128) f32 = 2 MiB per input per buffer

_TC_CACHE = None


def _tensorcores_per_chip() -> int:
    """2 on megacore chips (v4/v5p/v7x), else 1. Conservative: default 1."""
    global _TC_CACHE
    if _TC_CACHE is None:
        cores = 1
        try:
            kind = jax.devices()[0].device_kind.lower()
            if "lite" not in kind and any(
                    tag in kind for tag in ("v4", "v5p", "v7", "7x")):
                cores = 2
        except Exception:
            cores = 1
        _TC_CACHE = cores
    return _TC_CACHE


def _choose_block_rows(rows: int) -> int:
    """Block row count: full-dim if it fits, else a balanced 32-aligned split."""
    if rows <= _MAX_BLOCK_ROWS:
        return rows  # full-dim block: always legal, single unmasked grid step
    nb = pl.cdiv(rows, _MAX_BLOCK_ROWS)
    br = pl.cdiv(rows, nb)              # balance so the trailing block is ~full
    br = ((br + 31) // 32) * 32         # sublane alignment for f32/bf16/int8
    return min(br, _MAX_BLOCK_ROWS)


def _make_l1_kernel(block_rows: int, rows: int, blocks_per_core: int,
                    needs_mask: bool):
    folds = block_rows // _SUBLANES
    rem = block_rows % _SUBLANES
    # rem != 0 only happens on the single full-dim-block path (no masking).
    assert not (needs_mask and rem), "ragged sublane block must be single-block"

    def _fold(x32):
        # Fold (block_rows, 128) -> one (8, 128) partial-sum tile: pure VPU adds.
        return x32.reshape(folds, _SUBLANES, _LANES).sum(axis=0)

    def kernel(p_ref, g_ref, out_ref, acc_ref):
        i = pl.program_id(1)

        @pl.when(i == 0)
        def _():
            acc_ref[...] = jnp.zeros_like(acc_ref)

        absd = jnp.abs(p_ref[...].astype(jnp.float32) -
                       g_ref[...].astype(jnp.float32))

        if rem != 0:
            # Single small block whose row count is not a multiple of 8:
            # one-off cross-sublane sum folded into sublane 0 of the acc.
            row = jnp.sum(absd, axis=0, keepdims=True)            # (1, 128)
            sub = jax.lax.broadcasted_iota(jnp.int32, (_SUBLANES, _LANES), 0)
            acc_ref[...] += jnp.where(sub == 0, row, 0.0)
        elif not needs_mask:
            acc_ref[...] += _fold(absd)
        else:
            blk = pl.program_id(0) * blocks_per_core + i
            is_partial = (blk + 1) * block_rows > rows

            @pl.when(jnp.logical_not(is_partial))
            def _():
                # Fast path: full in-range block, no iota/cmp/select.
                acc_ref[...] += _fold(absd)

            @pl.when(is_partial)
            def _():
                # Trailing partial block or duplicated clamped block: mask with
                # a select (never multiply) so OOB garbage/NaN cannot propagate.
                row_ids = blk * block_rows + jax.lax.broadcasted_iota(
                    jnp.int32, (block_rows, _LANES), 0)
                acc_ref[...] += _fold(jnp.where(row_ids < rows, absd, 0.0))

        # Finalize once per core: lane-dense (8, 128) store of partial sums.
        @pl.when(i == pl.num_programs(1) - 1)
        def _():
            out_ref[0] = acc_ref[...]

    return kernel


def _l1_sum_pallas(p2: jax.Array, g2: jax.Array) -> jax.Array:
    """Sum of |p2 - g2| over a (rows, 128) slab via a Pallas streaming reduction."""
    rows = p2.shape[0]
    block_rows = _choose_block_rows(rows)
    num_blocks = pl.cdiv(rows, block_rows)
    # Split across both TensorCores only on chips that actually have two.
    ncores = _tensorcores_per_chip() if num_blocks >= 2 else 1
    bpc = pl.cdiv(num_blocks, ncores)
    needs_mask = (num_blocks * block_rows != rows) or (ncores * bpc != num_blocks)

    def in_index(c, i):
        # Clamp so duplicated trailing blocks (zero-masked in-kernel) still DMA
        # an in-bounds region.
        return (jnp.minimum(c * bpc + i, num_blocks - 1), 0)

    kernel = _make_l1_kernel(block_rows, rows, bpc, needs_mask)

    elems = p2.size
    cost = pl.CostEstimate(
        flops=3 * elems,
        transcendentals=0,
        bytes_accessed=elems * (p2.dtype.itemsize + g2.dtype.itemsize)
        + ncores * _SUBLANES * _LANES * 4,
    )

    partials = pl.pallas_call(
        kernel,
        out_shape=jax.ShapeDtypeStruct((ncores, _SUBLANES, _LANES), jnp.float32),
        grid_spec=pltpu.PrefetchScalarGridSpec(
            num_scalar_prefetch=0,
            grid=(ncores, bpc),
            in_specs=[
                pl.BlockSpec((block_rows, _LANES), in_index),
                pl.BlockSpec((block_rows, _LANES), in_index),
            ],
            out_specs=pl.BlockSpec((1, _SUBLANES, _LANES),
                                   lambda c, i: (c, 0, 0)),
            scratch_shapes=[pltpu.VMEM((_SUBLANES, _LANES), jnp.float32)],
        ),
        compiler_params=pltpu.CompilerParams(
            dimension_semantics=("parallel", "arbitrary"),
        ),
        cost_estimate=cost,
    )(p2, g2)
    return jnp.sum(partials)


def l1_loss(predict: jax.Array, gt: jax.Array) -> jax.Array:
    """mean(|predict - gt|) with the reduction hot path in a Pallas TPU kernel."""
    assert predict.shape == gt.shape, "predict/gt shape mismatch"
    n = predict.size
    if n == 0:
        return jnp.float32(0.0)

    flat_p = predict.reshape(-1)
    flat_g = gt.reshape(-1)
    rows = n // _LANES
    main_n = rows * _LANES

    if rows >= _SUBLANES:
        if main_n == n:
            p_main, g_main = flat_p, flat_g
        else:
            # TODO(synk): ragged element counts force a prefix-slice copy here
            # (~1.5x HBM traffic); a manual-DMA (memory_space=pl.ANY) kernel
            # over the flat array would avoid it.
            p_main = jax.lax.slice(flat_p, (0,), (main_n,))
            g_main = jax.lax.slice(flat_g, (0,), (main_n,))
        total = _l1_sum_pallas(p_main.reshape(rows, _LANES),
                               g_main.reshape(rows, _LANES))
        if main_n != n:
            tp = jax.lax.slice(flat_p, (main_n,), (n,)).astype(jnp.float32)
            tg = jax.lax.slice(flat_g, (main_n,), (n,)).astype(jnp.float32)
            total = total + jnp.sum(jnp.abs(tp - tg))
    else:
        # Fewer than ~1024 elements: plain jnp is cheaper than a kernel launch.
        total = jnp.sum(jnp.abs(flat_p.astype(jnp.float32) -
                                flat_g.astype(jnp.float32)))

    return (total / jnp.float32(n)).astype(jnp.float32)


if __name__ == "__main__":
    key = jax.random.PRNGKey(0)
    kp, kg, kp2, kg2, kp3, kg3 = jax.random.split(key, 6)

    # Small NCHW images consistent with an image-reconstruction loss.
    predict = jax.random.uniform(kp, (2, 4, 16, 16), dtype=jnp.float32)
    gt = jax.random.uniform(kg, (2, 4, 16, 16), dtype=jnp.float32)
    loss = jax.jit(l1_loss)(predict, gt)
    jax.block_until_ready(loss)
    ref = jnp.mean(jnp.abs(predict - gt))
    assert jnp.allclose(loss, ref, rtol=1e-5, atol=1e-6), (loss, ref)

    # Exercises the ragged (non-multiple-of-128 / non-multiple-of-8-rows) path.
    predict2 = jax.random.uniform(kp2, (1, 3, 40, 41), dtype=jnp.float32)
    gt2 = jax.random.uniform(kg2, (1, 3, 40, 41), dtype=jnp.float32)
    loss2 = jax.jit(l1_loss)(predict2, gt2)
    jax.block_until_ready(loss2)
    ref2 = jnp.mean(jnp.abs(predict2 - gt2))
    assert jnp.allclose(loss2, ref2, rtol=1e-5, atol=1e-6), (loss2, ref2)

    # Exercises the multi-block path with the gated trailing-block mask.
    predict3 = jax.random.uniform(kp3, (1, 3, 512, 360), dtype=jnp.float32)
    gt3 = jax.random.uniform(kg3, (1, 3, 512, 360), dtype=jnp.float32)
    loss3 = jax.jit(l1_loss)(predict3, gt3)
    jax.block_until_ready(loss3)
    ref3 = jnp.mean(jnp.abs(predict3 - gt3))
    assert jnp.allclose(loss3, ref3, rtol=1e-5, atol=1e-6), (loss3, ref3)

    print("KERNEL_OK")
</pallas_src>

<mosaic_0001>
module attributes {stable_mosaic.version = 11 : i64} {
  func.func @kernel(%arg0: i32, %arg1: i32, %arg2: memref<16x128xf32, #tpu.memory_space<vmem>>, %arg3: memref<16x128xf32, #tpu.memory_space<vmem>>, %arg4: memref<1x8x128xf32, #tpu.memory_space<vmem>>, %arg5: memref<8x128xf32, #tpu.memory_space<vmem>>) attributes {dimension_semantics = [#tpu.dimension_semantics<parallel>, #tpu.dimension_semantics<arbitrary>], iteration_bounds = array<i64: 1, 1>, scalar_prefetch = 0 : i64, scratch_operands = 1 : i64, tpu.core_type = #tpu.core_type<tc>, window_params = [{transform_indices = @transform_0, window_bounds = array<i64: 16, 128>}, {transform_indices = @transform_1, window_bounds = array<i64: 16, 128>}, {transform_indices = @transform_2, window_bounds = array<i64: 1, 8, 128>}]} {
    %c0_i32 = arith.constant 0 : i32
    %0 = arith.cmpi eq, %arg1, %c0_i32 : i32
    %1 = arith.extui %0 : i1 to i32
    %c0_i32_0 = arith.constant 0 : i32
    %2 = arith.cmpi ne, %1, %c0_i32_0 : i32
    scf.if %2 {
      %cst_10 = arith.constant 0.000000e+00 : f32
      %15 = vector.broadcast %cst_10 : f32 to vector<8x128xf32>
      %c0_11 = arith.constant 0 : index
      %c0_12 = arith.constant 0 : index
      %16 = vector.load %arg5[%c0_11, %c0_12] : memref<8x128xf32, #tpu.memory_space<vmem>>, vector<8x128xf32>
      tpu.vector_store %arg5[%c0_11, %c0_12], %15 {strides = array<i32>} : memref<8x128xf32, #tpu.memory_space<vmem>>, vector<8x128xf32>,
    } else {
    }
    %c0 = arith.constant 0 : index
    %c0_1 = arith.constant 0 : index
    %3 = vector.load %arg2[%c0, %c0_1] : memref<16x128xf32, #tpu.memory_space<vmem>>, vector<16x128xf32>
    %c0_2 = arith.constant 0 : index
    %c0_3 = arith.constant 0 : index
    %4 = vector.load %arg3[%c0_2, %c0_3] : memref<16x128xf32, #tpu.memory_space<vmem>>, vector<16x128xf32>
    %5 = arith.subf %3, %4 : vector<16x128xf32>
    %6 = math.absf %5 : vector<16x128xf32>
    %c0_4 = arith.constant 0 : index
    %c0_5 = arith.constant 0 : index
    %7 = vector.load %arg5[%c0_4, %c0_5] : memref<8x128xf32, #tpu.memory_space<vmem>>, vector<8x128xf32>
    %8 = vector.shape_cast %6 : vector<16x128xf32> to vector<2x8x128xf32>
    %cst = arith.constant dense<0.000000e+00> : vector<8x128xf32>
    %9 = vector.multi_reduction <add>, %8, %cst [0] : vector<2x8x128xf32> to vector<8x128xf32>
    %10 = arith.addf %7, %9 : vector<8x128xf32>
    %c0_6 = arith.constant 0 : index
    %c0_7 = arith.constant 0 : index
    %11 = vector.load %arg5[%c0_6, %c0_7] : memref<8x128xf32, #tpu.memory_space<vmem>>, vector<8x128xf32>
    tpu.vector_store %arg5[%c0_6, %c0_7], %10 {strides = array<i32>} : memref<8x128xf32, #tpu.memory_space<vmem>>, vector<8x128xf32>,
    %c0_i32_8 = arith.constant 0 : i32
    %12 = arith.cmpi eq, %arg1, %c0_i32_8 : i32
    %13 = arith.extui %12 : i1 to i32
    %c0_i32_9 = arith.constant 0 : i32
    %14 = arith.cmpi ne, %13, %c0_i32_9 : i32
    scf.if %14 {
      %c0_10 = arith.constant 0 : index
      %c0_11 = arith.constant 0 : index
      %15 = vector.load %arg5[%c0_10, %c0_11] : memref<8x128xf32, #tpu.memory_space<vmem>>, vector<8x128xf32>
      %c0_12 = arith.constant 0 : index
      %c0_13 = arith.constant 0 : index
      %c0_14 = arith.constant 0 : index
      %16 = vector.load %arg4[%c0_12, %c0_13, %c0_14] : memref<1x8x128xf32, #tpu.memory_space<vmem>>, vector<1x8x128xf32>
      %17 = vector.shape_cast %16 : vector<1x8x128xf32> to vector<8x128xf32>
      %18 = vector.shape_cast %15 : vector<8x128xf32> to vector<1x8x128xf32>
      tpu.vector_store %arg4[%c0_12, %c0_13, %c0_14], %18 {strides = array<i32>} : memref<1x8x128xf32, #tpu.memory_space<vmem>>, vector<1x8x128xf32>,
    } else {
    }
    return
  }
  func.func @transform_0(%arg0: i32, %arg1: i32) -> (i32, i32) {
    %c1_i32 = arith.constant 1 : i32
    %0 = arith.muli %arg0, %c1_i32 : i32
    %1 = arith.addi %0, %arg1 : i32
    %c0_i32 = arith.constant 0 : i32
    %2 = arith.minsi %1, %c0_i32 : i32
    %c0_i32_0 = arith.constant 0 : i32
    %c0_i32_1 = arith.constant 0 : i32
    return %2, %c0_i32_0 : i32, i32
  }
  func.func @transform_1(%arg0: i32, %arg1: i32) -> (i32, i32) {
    %c1_i32 = arith.constant 1 : i32
    %0 = arith.muli %arg0, %c1_i32 : i32
    %1 = arith.addi %0, %arg1 : i32
    %c0_i32 = arith.constant 0 : i32
    %2 = arith.minsi %1, %c0_i32 : i32
    %c0_i32_0 = arith.constant 0 : i32
    %c0_i32_1 = arith.constant 0 : i32
    return %2, %c0_i32_0 : i32, i32
  }
  func.func @transform_2(%arg0: i32, %arg1: i32) -> (i32, i32, i32) {
    %c0_i32 = arith.constant 0 : i32
    %c0_i32_0 = arith.constant 0 : i32
    %c0_i32_1 = arith.constant 0 : i32
    return %arg0, %c0_i32, %c0_i32_0 : i32, i32, i32
  }
}

</mosaic_0001>

<llo_original>
// kernel: l1_loss.1
$region0: #{l1_loss.1}
  #allocation0 [shape = 'u32[]', space=smem, size = 0x4, offset = 0x4, fixed_abs, tag = 'smem constant byte address 0x4 - core index']
  #allocation1 [shape = 'u32[72,128]{1,0:T(1,128)}', space=vmem, size = 0x9000, scoped, tag = 'internal scratch']
  #allocation2 [shape = 'f32[8,128]{1,0:T(8,128)}', space=vmem, size = 0x1000, scoped, tag = 'scratch operand']
  %s0 = inlined_call_operand.vmem [shape: f32[16,128], index: 0, kind: input, shape index: {}]
  %s1 = inlined_call_operand.vmem [shape: f32[16,128], index: 1, kind: input, shape index: {}]
  %s2 = inlined_call_operand.vmem [shape: f32[1,8,128], index: 2, kind: output, shape index: {}]
  %s3 = sld [smem:[#allocation0]]
  $region26: #{l1_loss.1} parent=0
    _
  %s5 = ssub.s32 1, %s3
  %s6 = scalar_select 0, %s5, %s3
  // Predicated region
  $region2: #{l1_loss.1} parent=0 // pred_check
    _
  $region3: #{l1_loss.1} parent=0 // pred_check_branch
    %8 = sbr.rel (0) target = $region5
  $region4: #{l1_loss.1} parent=0 // pred_region
    %s9 = sadd.s32 0, 0
    %p10 = scmp.lt.s32.totalorder %s9, 0
    %s11 = scalar_select %p10, %s9, 0
    %s12 = smul.u32 2, %s11
    %p13 = scmp.lt.s32.totalorder %s12, 1
    %s14 = scalar_select %p13, %s12, 1
    %s15 = smul.addr %s14, 8
    %s16 = scalar_lea.vmem %s0, %s15
    %s17 = sadd.s32 0, 0
    %p18 = scmp.lt.s32.totalorder %s17, 0
    %s19 = scalar_select %p18, %s17, 0
    %s20 = smul.u32 2, %s19
  $region5: #{l1_loss.1} parent=0 // pred_fallthru
    _
  // Predicated region
  $region6: #{l1_loss.1} parent=0 // pred_check
    _
  $region7: #{l1_loss.1} parent=0 // pred_check_branch
    %22 = sbr.rel (0) target = $region9
  $region8: #{l1_loss.1} parent=0 // pred_region
    %s23 = sadd.s32 0, 0
    %p24 = scmp.lt.s32.totalorder %s23, 0
    %s25 = scalar_select %p24, %s23, 0
    %s26 = smul.u32 2, %s25
    %p27 = scmp.lt.s32.totalorder %s26, 1
    %s28 = scalar_select %p27, %s26, 1
    %s29 = smul.addr %s28, 8
    %s30 = scalar_lea.vmem %s1, %s29
    %s31 = sadd.s32 0, 0
    %p32 = scmp.lt.s32.totalorder %s31, 0
    %s33 = scalar_select %p32, %s31, 0
    %s34 = smul.u32 2, %s33
  $region9: #{l1_loss.1} parent=0 // pred_fallthru
    _
  %s35 = sadd.s32 0, 0
  %p36 = scmp.lt.s32.totalorder %s35, 0
  %s37 = scalar_select %p36, %s35, 0
  %s38 = smul.u32 2, %s37
  %p39 = scmp.lt.s32.totalorder %s38, 1
  %s40 = scalar_select %p39, %s38, 1
  %s41 = smul.addr %s40, 8
  %s42 = scalar_lea.vmem %s0, %s41
  %s43 = sadd.s32 0, 0
  %p44 = scmp.lt.s32.totalorder %s43, 0
  %s45 = scalar_select %p44, %s43, 0
  %s46 = smul.u32 2, %s45
  %p47 = scmp.lt.s32.totalorder %s46, 1
  %s48 = scalar_select %p47, %s46, 1
  %s49 = smul.addr %s48, 8
  %s50 = scalar_lea.vmem %s1, %s49
  %s51 = sadd.s32 0, 0
  %p52 = scmp.lt.s32.totalorder %s51, 0
  %s53 = scalar_select %p52, %s51, 0
  %s54 = smul.u32 2, %s53
  %p55 = scmp.lt.s32.totalorder %s54, 1
  %s56 = scalar_select %p55, %s54, 1
  %s57 = smul.addr %s56, 8
  %s58 = scalar_lea.vmem %s0, %s57
  %s59 = sadd.s32 0, 0
  %p60 = scmp.lt.s32.totalorder %s59, 0
  %s61 = scalar_select %p60, %s59, 0
  %s62 = smul.u32 2, %s61
  %s63 = sadd.s32 0, 0
  %p64 = scmp.lt.s32.totalorder %s63, 0
  %s65 = scalar_select %p64, %s63, 0
  %s66 = smul.u32 2, %s65
  %p67 = scmp.lt.s32.totalorder %s66, 1
  %s68 = scalar_select %p67, %s66, 1
  %s69 = smul.addr %s68, 8
  %s70 = scalar_lea.vmem %s1, %s69
  %s71 = sadd.s32 0, 0
  %p72 = scmp.lt.s32.totalorder %s71, 0
  %s73 = scalar_select %p72, %s71, 0
  %s74 = smul.u32 2, %s73
  %p75 = scmp.eq.s32.totalorder 0, 0
  // Predicated region
  $region10: #{l1_loss.1} parent=0 // pred_check
    %p76 = pneg %p75
  $region11: #{l1_loss.1} parent=0 // pred_check_branch
    %78 = sbr.rel (%p76) target = $region13
  $region12: #{l1_loss.1} parent=0 // pred_region
    %79 = vst [vmem:[#allocation2] sm:$0xff] 0.0
  $region13: #{l1_loss.1} parent=0 // pred_fallthru
    _
  %v80 = vld [vmem:[%s58] sm:$0xff]
  %v81 = vld [vmem:[%s58 + $0x8] sm:$0xff]
  %v82 = vld [vmem:[%s70] sm:$0xff]
  %v83 = vld [vmem:[%s70 + $0x8] sm:$0xff]
  %v84 = vsub.f32 %v80, %v82
  %v85 = vsub.f32 %v81, %v83
  %v86 = vand.u32 2147483647, %v84
  %v87 = vand.u32 2147483647, %v85
  %v88 = vld [vmem:[#allocation2] sm:$0xff]
  %v89 = vadd.f32 %v86, %v87
  %v90 = vadd.f32 %v88, %v89
  %91 = vst [vmem:[#allocation2] sm:$0xff] %v90
  // Predicated region
  $region14: #{l1_loss.1} parent=0 // pred_check
    %p92 = pneg %p75
  $region15: #{l1_loss.1} parent=0 // pred_check_branch
    %94 = sbr.rel (%p92) target = $region17
  $region16: #{l1_loss.1} parent=0 // pred_region
    %v95 = vld [vmem:[#allocation2] sm:$0xff]
    %96 = vst [vmem:[%s2] sm:$0xff] %v95
  $region17: #{l1_loss.1} parent=0 // pred_fallthru
    _
  // Predicated region
  $region18: #{l1_loss.1} parent=0 // pred_check
    _
  $region19: #{l1_loss.1} parent=0 // pred_check_branch
    %98 = sbr.rel (0) target = $region21
  $region20: #{l1_loss.1} parent=0 // pred_region
    _
  $region21: #{l1_loss.1} parent=0 // pred_fallthru
    _
  // Predicated region
  $region22: #{l1_loss.1} parent=0 // pred_check
    _
  $region23: #{l1_loss.1} parent=0 // pred_check_branch
    %100 = sbr.rel (0) target = $region25
  $region24: #{l1_loss.1} parent=0 // pred_region
    _
  $region25: #{l1_loss.1} parent=0 // pred_fallthru
    _

</llo_original>
